<compile_context>
chip_gen: v6e
topology: v6e:2x2x1
jax: 0.10.0
libtpu: 0.0.40
codegen_flags: <defaults>
</compile_context>

<pallas_src>
import jax
import jax.numpy as jnp
import numpy as np
from jax.experimental import pallas as pl
from jax.experimental.pallas import tpu as pltpu


# ----------------------------------------------------------------------------
# Fused kernel: input Linear -> (collapsed) attention -> folded output Linear+Tanh
# ----------------------------------------------------------------------------
def _generator_kernel(x_ref, win_ref, bin_ref, wv_ref, bv_ref,
                      wred_ref, bout_ref, out_ref):
    # input_layer: h = x @ W_in^T + b_in                              (TB, D)
    h = jnp.dot(x_ref[...], win_ref[...],
                preferred_element_type=jnp.float32) + bin_ref[...]

    # Attention collapses: all D repeated rows are identical, softmax of the
    # constant score row is exactly uniform, so attn @ V == V == value(h).
    # (Q/K projections provably do not affect the output and are omitted.)
    v = jnp.dot(h, wv_ref[...],
                preferred_element_type=jnp.float32) + bv_ref[...]     # (TB, D)

    # Folded output layer: flat @ W_out^T == v @ W_red  (repeat folded into W).
    acc = jnp.dot(v, wred_ref[...],
                  preferred_element_type=jnp.float32) + bout_ref[...]  # (TB, TN)
    out_ref[...] = jnp.tanh(acc)


def _round_up(a, m):
    return ((a + m - 1) // m) * m


# ----------------------------------------------------------------------------
# Wrapper
# ----------------------------------------------------------------------------
def generator_forward(x, params):
    """x: (B, D) float32; returns (B, out_dim) float32."""
    B, D = x.shape
    out_dim = params["w_out"].shape[0]

    # ---- batch tiling (fills sublanes, amortizes per-step overhead) ----
    TB = B if B <= 8 else 8
    B_pad = _round_up(B, TB)
    x_p = jnp.pad(x, ((0, B_pad - B), (0, 0))) if B_pad != B else x

    # ---- lane-dense output tiling: pad out_dim to a multiple of the tile ----
    TN = 512 if out_dim >= 512 else _round_up(out_dim, 128)
    out_dim_pad = _round_up(out_dim, TN)

    # ---- weight preprocessing (pure XLA, done once) ----
    win_t = params["w_in"].T                         # (D, D)
    bin_ = params["b_in"].reshape(1, D)              # (1, D)
    wv_t = params["w_v"].T                           # (D, D)
    bv_ = params["b_v"].reshape(1, D)                # (1, D)

    # Fold the D-fold sequence repeat into the output weight:
    #   W_red[j, n] = sum_s W_out[n, s*D + j]        (D, out_dim)
    w_red = params["w_out"].T.reshape(D, D, out_dim).sum(axis=0)
    b_out = params["b_out"].reshape(1, out_dim)
    if out_dim_pad != out_dim:
        w_red = jnp.pad(w_red, ((0, 0), (0, out_dim_pad - out_dim)))
        b_out = jnp.pad(b_out, ((0, 0), (0, out_dim_pad - out_dim)))

    grid = (B_pad // TB, out_dim_pad // TN)

    out = pl.pallas_call(
        _generator_kernel,
        out_shape=jax.ShapeDtypeStruct((B_pad, out_dim_pad), jnp.float32),
        grid=grid,
        in_specs=[
            pl.BlockSpec((TB, D), lambda b, n: (b, 0)),      # x
            pl.BlockSpec((D, D), lambda b, n: (0, 0)),       # W_in^T  (VMEM-resident)
            pl.BlockSpec((1, D), lambda b, n: (0, 0)),       # b_in
            pl.BlockSpec((D, D), lambda b, n: (0, 0)),       # W_v^T   (VMEM-resident)
            pl.BlockSpec((1, D), lambda b, n: (0, 0)),       # b_v
            pl.BlockSpec((D, TN), lambda b, n: (0, n)),      # W_red tile (lane-dense)
            pl.BlockSpec((1, TN), lambda b, n: (0, n)),      # b_out tile
        ],
        out_specs=pl.BlockSpec((TB, TN), lambda b, n: (b, n)),
        compiler_params=pltpu.CompilerParams(
            dimension_semantics=("parallel", "parallel")),
    )(x_p, win_t, bin_, wv_t, bv_, w_red, b_out)

    return out[:B, :out_dim]


# ----------------------------------------------------------------------------
# Pure-JAX reference mirroring the PyTorch module literally (full attention path).
# ----------------------------------------------------------------------------
def generator_reference(x, params):
    D = params["w_in"].shape[0]
    P = jax.lax.Precision.HIGHEST

    h = jnp.dot(x, params["w_in"].T, precision=P) + params["b_in"]        # (B, D)
    xr = jnp.repeat(h[:, None, :], D, axis=1)                             # (B, D, D)

    Q = jnp.einsum("bsd,ed->bse", xr, params["w_q"], precision=P) + params["b_q"]
    K = jnp.einsum("bsd,ed->bse", xr, params["w_k"], precision=P) + params["b_k"]
    V = jnp.einsum("bsd,ed->bse", xr, params["w_v"], precision=P) + params["b_v"]

    scores = jnp.einsum("bqd,bkd->bqk", Q, K, precision=P) / (float(D) ** 0.5)
    attn = jax.nn.softmax(scores, axis=-1)
    wv = jnp.einsum("bqk,bkd->bqd", attn, V, precision=P)

    flat = wv.reshape(x.shape[0], D * D)
    return jnp.tanh(jnp.dot(flat, params["w_out"].T, precision=P) + params["b_out"])


def init_params(key, in_dim, out_dim):
    """PyTorch nn.Linear-style uniform(-1/sqrt(fan_in), 1/sqrt(fan_in)) init."""
    ks = jax.random.split(key, 10)

    def lin(kw, kb, fan_in, fan_out):
        s = 1.0 / np.sqrt(fan_in)
        w = jax.random.uniform(kw, (fan_out, fan_in), jnp.float32, -s, s)
        b = jax.random.uniform(kb, (fan_out,), jnp.float32, -s, s)
        return w, b

    w_in, b_in = lin(ks[0], ks[1], in_dim, in_dim)
    w_q, b_q = lin(ks[2], ks[3], in_dim, in_dim)
    w_k, b_k = lin(ks[4], ks[5], in_dim, in_dim)
    w_v, b_v = lin(ks[6], ks[7], in_dim, in_dim)
    w_out, b_out = lin(ks[8], ks[9], in_dim * in_dim, out_dim)
    return {
        "w_in": w_in, "b_in": b_in,
        "w_q": w_q, "b_q": b_q,
        "w_k": w_k, "b_k": b_k,
        "w_v": w_v, "b_v": b_v,
        "w_out": w_out, "b_out": b_out,
    }


if __name__ == "__main__":
    key = jax.random.PRNGKey(0)

    # Case 1: batch=2, in_dim=16, out_dim=in_dim**2=256 (small shapes
    # consistent with the module's Generator(in_dim, in_dim**2) pattern).
    B, IN_DIM = 2, 16
    OUT_DIM = IN_DIM * IN_DIM
    k_x, k_p, key = jax.random.split(key, 3)
    params = init_params(k_p, IN_DIM, OUT_DIM)
    x = jax.random.normal(k_x, (B, IN_DIM), jnp.float32)

    out = jax.block_until_ready(generator_forward(x, params))
    ref = generator_reference(x, params)
    np.testing.assert_allclose(np.asarray(out), np.asarray(ref), rtol=1e-4, atol=1e-4)

    # Case 2: non-power-of-two dims exercise the out_dim padding / masking path.
    B2, D2, OUT2 = 3, 24, 200
    k_x2, k_p2, key = jax.random.split(key, 3)
    params2 = init_params(k_p2, D2, OUT2)
    x2 = jax.random.normal(k_x2, (B2, D2), jnp.float32)

    out2 = jax.block_until_ready(generator_forward(x2, params2))
    ref2 = generator_reference(x2, params2)
    np.testing.assert_allclose(np.asarray(out2), np.asarray(ref2), rtol=1e-4, atol=1e-4)

    print("KERNEL_OK")
</pallas_src>

<mosaic_0001>
module attributes {stable_mosaic.version = 11 : i64} {
  func.func @_generator_kernel(%arg0: i32, %arg1: i32, %arg2: memref<2x16xf32, #tpu.memory_space<vmem>>, %arg3: memref<16x16xf32, #tpu.memory_space<vmem>>, %arg4: memref<1x16xf32, #tpu.memory_space<vmem>>, %arg5: memref<16x16xf32, #tpu.memory_space<vmem>>, %arg6: memref<1x16xf32, #tpu.memory_space<vmem>>, %arg7: memref<16x256xf32, #tpu.memory_space<vmem>>, %arg8: memref<1x256xf32, #tpu.memory_space<vmem>>, %arg9: memref<2x256xf32, #tpu.memory_space<vmem>>) attributes {dimension_semantics = [#tpu.dimension_semantics<parallel>, #tpu.dimension_semantics<parallel>], iteration_bounds = array<i64: 1, 1>, scalar_prefetch = 0 : i64, scratch_operands = 0 : i64, tpu.core_type = #tpu.core_type<tc>, window_params = [{transform_indices = @transform_0, window_bounds = array<i64: 2, 16>}, {pipeline_mode = #tpu.pipeline_mode<synchronous>, transform_indices = @transform_1, window_bounds = array<i64: 16, 16>}, {pipeline_mode = #tpu.pipeline_mode<synchronous>, transform_indices = @transform_2, window_bounds = array<i64: 1, 16>}, {pipeline_mode = #tpu.pipeline_mode<synchronous>, transform_indices = @transform_3, window_bounds = array<i64: 16, 16>}, {pipeline_mode = #tpu.pipeline_mode<synchronous>, transform_indices = @transform_4, window_bounds = array<i64: 1, 16>}, {transform_indices = @transform_5, window_bounds = array<i64: 16, 256>}, {transform_indices = @transform_6, window_bounds = array<i64: 1, 256>}, {transform_indices = @transform_7, window_bounds = array<i64: 2, 256>}]} {
    %c0 = arith.constant 0 : index
    %c0_0 = arith.constant 0 : index
    %0 = vector.load %arg2[%c0, %c0_0] : memref<2x16xf32, #tpu.memory_space<vmem>>, vector<2x16xf32>
    %c0_1 = arith.constant 0 : index
    %c0_2 = arith.constant 0 : index
    %1 = vector.load %arg3[%c0_1, %c0_2] : memref<16x16xf32, #tpu.memory_space<vmem>>, vector<16x16xf32>
    %cst = arith.constant dense<0.000000e+00> : vector<2x16xf32>
    %2 = tpu.matmul %0, %1, %cst {dimension_numbers = #tpu.dot_dimension_numbers<[1], [0], [0], [1], [0, 0, 1, 1], [], []>} : vector<2x16xf32>, vector<16x16xf32>, vector<2x16xf32> -> vector<2x16xf32>
    %c0_3 = arith.constant 0 : index
    %c0_4 = arith.constant 0 : index
    %3 = vector.load %arg4[%c0_3, %c0_4] : memref<1x16xf32, #tpu.memory_space<vmem>>, vector<1x16xf32>
    %4 = vector.broadcast %3 : vector<1x16xf32> to vector<2x16xf32>
    %5 = arith.addf %2, %4 : vector<2x16xf32>
    %c0_5 = arith.constant 0 : index
    %c0_6 = arith.constant 0 : index
    %6 = vector.load %arg5[%c0_5, %c0_6] : memref<16x16xf32, #tpu.memory_space<vmem>>, vector<16x16xf32>
    %cst_7 = arith.constant dense<0.000000e+00> : vector<2x16xf32>
    %7 = tpu.matmul %5, %6, %cst_7 {dimension_numbers = #tpu.dot_dimension_numbers<[1], [0], [0], [1], [0, 0, 1, 1], [], []>} : vector<2x16xf32>, vector<16x16xf32>, vector<2x16xf32> -> vector<2x16xf32>
    %c0_8 = arith.constant 0 : index
    %c0_9 = arith.constant 0 : index
    %8 = vector.load %arg6[%c0_8, %c0_9] : memref<1x16xf32, #tpu.memory_space<vmem>>, vector<1x16xf32>
    %9 = vector.broadcast %8 : vector<1x16xf32> to vector<2x16xf32>
    %10 = arith.addf %7, %9 : vector<2x16xf32>
    %c0_10 = arith.constant 0 : index
    %c0_11 = arith.constant 0 : index
    %11 = vector.load %arg7[%c0_10, %c0_11] : memref<16x256xf32, #tpu.memory_space<vmem>>, vector<16x256xf32>
    %cst_12 = arith.constant dense<0.000000e+00> : vector<2x256xf32>
    %12 = tpu.matmul %10, %11, %cst_12 {dimension_numbers = #tpu.dot_dimension_numbers<[1], [0], [0], [1], [0, 0, 1, 1], [], []>} : vector<2x16xf32>, vector<16x256xf32>, vector<2x256xf32> -> vector<2x256xf32>
    %c0_13 = arith.constant 0 : index
    %c0_14 = arith.constant 0 : index
    %13 = vector.load %arg8[%c0_13, %c0_14] : memref<1x256xf32, #tpu.memory_space<vmem>>, vector<1x256xf32>
    %14 = vector.broadcast %13 : vector<1x256xf32> to vector<2x256xf32>
    %15 = arith.addf %12, %14 : vector<2x256xf32>
    %16 = math.tanh %15 : vector<2x256xf32>
    %c0_15 = arith.constant 0 : index
    %c0_16 = arith.constant 0 : index
    %17 = vector.load %arg9[%c0_15, %c0_16] : memref<2x256xf32, #tpu.memory_space<vmem>>, vector<2x256xf32>
    tpu.vector_store %arg9[%c0_15, %c0_16], %16 {strides = array<i32>} : memref<2x256xf32, #tpu.memory_space<vmem>>, vector<2x256xf32>,
    return
  }
  func.func @transform_0(%arg0: i32, %arg1: i32) -> (i32, i32) {
    %c0_i32 = arith.constant 0 : i32
    %c0_i32_0 = arith.constant 0 : i32
    return %arg0, %c0_i32 : i32, i32
  }
  func.func @transform_1(%arg0: i32, %arg1: i32) -> (i32, i32) {
    %c0_i32 = arith.constant 0 : i32
    %c0_i32_0 = arith.constant 0 : i32
    %c0_i32_1 = arith.constant 0 : i32
    return %c0_i32, %c0_i32_0 : i32, i32
  }
  func.func @transform_2(%arg0: i32, %arg1: i32) -> (i32, i32) {
    %c0_i32 = arith.constant 0 : i32
    %c0_i32_0 = arith.constant 0 : i32
    %c0_i32_1 = arith.constant 0 : i32
    return %c0_i32, %c0_i32_0 : i32, i32
  }
  func.func @transform_3(%arg0: i32, %arg1: i32) -> (i32, i32) {
    %c0_i32 = arith.constant 0 : i32
    %c0_i32_0 = arith.constant 0 : i32
    %c0_i32_1 = arith.constant 0 : i32
    return %c0_i32, %c0_i32_0 : i32, i32
  }
  func.func @transform_4(%arg0: i32, %arg1: i32) -> (i32, i32) {
    %c0_i32 = arith.constant 0 : i32
    %c0_i32_0 = arith.constant 0 : i32
    %c0_i32_1 = arith.constant 0 : i32
    return %c0_i32, %c0_i32_0 : i32, i32
  }
  func.func @transform_5(%arg0: i32, %arg1: i32) -> (i32, i32) {
    %c0_i32 = arith.constant 0 : i32
    %c0_i32_0 = arith.constant 0 : i32
    return %c0_i32, %arg1 : i32, i32
  }
  func.func @transform_6(%arg0: i32, %arg1: i32) -> (i32, i32) {
    %c0_i32 = arith.constant 0 : i32
    %c0_i32_0 = arith.constant 0 : i32
    return %c0_i32, %arg1 : i32, i32
  }
  func.func @transform_7(%arg0: i32, %arg1: i32) -> (i32, i32) {
    %c0_i32 = arith.constant 0 : i32
    return %arg0, %arg1 : i32, i32
  }
}

</mosaic_0001>

<llo_original>
// kernel: tpu_custom_call.1
$region0: #{tpu_custom_call.1}
  #allocation0 [shape = 'u32[]', space=smem, size = 0x4, offset = 0x4, fixed_abs, tag = 'smem constant byte address 0x4 - core index']
  #allocation1 [shape = 'u32[144,128]{1,0:T(1,128)}', space=vmem, size = 0x12000, scoped, tag = 'internal scratch']
  %s0 = inlined_call_operand.hbm [shape: f32[2,16], index: 0, kind: input, shape index: {}]
  %s1 = inlined_call_operand.hbm [shape: f32[16,16], index: 1, kind: input, shape index: {}]
  %s2 = inlined_call_operand.vmem [shape: f32[1,16], index: 2, kind: input, shape index: {}]
  %s3 = inlined_call_operand.hbm [shape: f32[16,16], index: 3, kind: input, shape index: {}]
  %s4 = inlined_call_operand.vmem [shape: f32[1,16], index: 4, kind: input, shape index: {}]
  %s5 = inlined_call_operand.hbm [shape: f32[16,256], index: 5, kind: input, shape index: {}]
  %s6 = inlined_call_operand.vmem [shape: f32[1,256], index: 6, kind: input, shape index: {}]
  %s7 = inlined_call_operand.hbm [shape: f32[2,256], index: 7, kind: output, shape index: {}]
  %s8 = sld [smem:[#allocation0]]
  $region54: #{tpu_custom_call.1} parent=0
    _
  %s10 = ssub.s32 1, %s8
  %s11 = scalar_select 0, %s10, %s8
  $region1: #{tpu_custom_call.1} parent=0
    #allocation2 [shape = 'u8[1024]{0}', space=vmem, size = 0x400, scoped, tag = 'input window, operand 0, single buffered']
    #allocation3 [shape = 's32[1]{0}', space=sflag, size = 0x4, scoped, tag = 'scoped memory for tpu_custom_call.1']
    #allocation4 [shape = 's32[1]{0}', space=sflag, size = 0x4, scoped, tag = 'scoped memory for tpu_custom_call.1']
    #allocation5 [shape = 'u8[8192]{0}', space=vmem, size = 0x2000, scoped, tag = 'input window, operand 1, single buffered']
    #allocation6 [shape = 's32[1]{0}', space=sflag, size = 0x4, scoped, tag = 'scoped memory for tpu_custom_call.1']
    #allocation7 [shape = 'u8[8192]{0}', space=vmem, size = 0x2000, scoped, tag = 'input window, operand 3, single buffered']
    #allocation8 [shape = 'u8[16384]{0}', space=vmem, size = 0x4000, scoped, tag = 'input window, operand 5, single buffered']
    #allocation9 [shape = 's32[1]{0}', space=sflag, size = 0x4, scoped, tag = 'scoped memory for tpu_custom_call.1']
    #allocation10 [shape = 'u8[2048]{0}', space=vmem, size = 0x800, scoped, tag = 'output window, operand 0, single buffered']
    %12 = vsyncpa [#allocation3], 0
    %13 = vsyncpa [#allocation6], 0
    %14 = vsyncpa [#allocation9], 0
    %15 = vsyncpa [#allocation4], 0
    // Predicated region
    $region2: #{tpu_custom_call.1} parent=1 // pred_check
      _
    $region3: #{tpu_custom_call.1} parent=1 // pred_check_branch
      %17 = sbr.rel (0) target = $region5
    $region4: #{tpu_custom_call.1} parent=1 // pred_region
      %s19 = ssub.s32 32, 32
      %20 = vsyncadd [#allocation3], %s19
      %s22 = sshll.u32 [#allocation2], 4
      %s23 = int_to_ptr.vmem [resolvable:$true] %s22
      %25 = dma.hbm_to_vmem [thread:$0]  %s0, 32, %s23, [#allocation3]
    $region5: #{tpu_custom_call.1} parent=1 // pred_fallthru
      _
    // Predicated region
    $region6: #{tpu_custom_call.1} parent=1 // pred_check
      _
    $region7: #{tpu_custom_call.1} parent=1 // pred_check_branch
      %27 = sbr.rel (0) target = $region9
    $region8: #{tpu_custom_call.1} parent=1 // pred_region
      %s29 = ssub.s32 256, 256
      %30 = vsyncadd [#allocation6], %s29
      %s31 = sshll.u32 [#allocation5], 4
      %s32 = int_to_ptr.vmem [resolvable:$true] %s31
      %37 = dma.hbm_to_vmem [thread:$0]  %s1, 256, %s32, [#allocation6], 128, 128, 8
    $region9: #{tpu_custom_call.1} parent=1 // pred_fallthru
      _
    // Predicated region
    $region10: #{tpu_custom_call.1} parent=1 // pred_check
      _
    $region11: #{tpu_custom_call.1} parent=1 // pred_check_branch
      %39 = sbr.rel (0) target = $region13
    $region12: #{tpu_custom_call.1} parent=1 // pred_region
      _
    $region13: #{tpu_custom_call.1} parent=1 // pred_fallthru
      _
    // Predicated region
    $region14: #{tpu_custom_call.1} parent=1 // pred_check
      _
    $region15: #{tpu_custom_call.1} parent=1 // pred_check_branch
      %41 = sbr.rel (0) target = $region17
    $region16: #{tpu_custom_call.1} parent=1 // pred_region
      %s43 = ssub.s32 256, 256
      %44 = vsyncadd [#allocation6], %s43
      %s45 = sshll.u32 [#allocation7], 4
      %s46 = int_to_ptr.vmem [resolvable:$true] %s45
      %51 = dma.hbm_to_vmem [thread:$0]  %s3, 256, %s46, [#allocation6], 128, 128, 8
    $region17: #{tpu_custom_call.1} parent=1 // pred_fallthru
      _
    // Predicated region
    $region18: #{tpu_custom_call.1} parent=1 // pred_check
      _
    $region19: #{tpu_custom_call.1} parent=1 // pred_check_branch
      %53 = sbr.rel (0) target = $region21
    $region20: #{tpu_custom_call.1} parent=1 // pred_region
      _
    $region21: #{tpu_custom_call.1} parent=1 // pred_fallthru
      _
    // Predicated region
    $region22: #{tpu_custom_call.1} parent=1 // pred_check
      _
    $region23: #{tpu_custom_call.1} parent=1 // pred_check_branch
      %55 = sbr.rel (0) target = $region25
    $region24: #{tpu_custom_call.1} parent=1 // pred_region
      %s57 = ssub.s32 512, 512
      %58 = vsyncadd [#allocation9], %s57
      %s59 = sshll.u32 [#allocation8], 4
      %s60 = int_to_ptr.vmem [resolvable:$true] %s59
      %65 = dma.hbm_to_vmem [thread:$0]  %s5, 512, %s60, [#allocation9], 256, 256, 16
    $region25: #{tpu_custom_call.1} parent=1 // pred_fallthru
      _
    // Predicated region
    $region26: #{tpu_custom_call.1} parent=1 // pred_check
      _
    $region27: #{tpu_custom_call.1} parent=1 // pred_check_branch
      %67 = sbr.rel (0) target = $region29
    $region28: #{tpu_custom_call.1} parent=1 // pred_region
      _
    $region29: #{tpu_custom_call.1} parent=1 // pred_fallthru
      _
    // Predicated region
    $region30: #{tpu_custom_call.1} parent=1 // pred_check
      _
    $region31: #{tpu_custom_call.1} parent=1 // pred_check_branch
      %69 = sbr.rel (0) target = $region33
    $region32: #{tpu_custom_call.1} parent=1 // pred_region
      %70 = dma.done [#allocation3], 32
    $region33: #{tpu_custom_call.1} parent=1 // pred_fallthru
      _
    // Predicated region
    $region34: #{tpu_custom_call.1} parent=1 // pred_check
      _
    $region35: #{tpu_custom_call.1} parent=1 // pred_check_branch
      %72 = sbr.rel (0) target = $region37
    $region36: #{tpu_custom_call.1} parent=1 // pred_region
      %73 = dma.done [#allocation6], 256
    $region37: #{tpu_custom_call.1} parent=1 // pred_fallthru
      _
    // Predicated region
    $region38: #{tpu_custom_call.1} parent=1 // pred_check
      _
    $region39: #{tpu_custom_call.1} parent=1 // pred_check_branch
      %75 = sbr.rel (0) target = $region41
    $region40: #{tpu_custom_call.1} parent=1 // pred_region
      %76 = dma.done [#allocation6], 256
    $region41: #{tpu_custom_call.1} parent=1 // pred_fallthru
      _
    // Predicated region
    $region42: #{tpu_custom_call.1} parent=1 // pred_check
      _
    $region43: #{tpu_custom_call.1} parent=1 // pred_check_branch
      %78 = sbr.rel (0) target = $region45
    $region44: #{tpu_custom_call.1} parent=1 // pred_region
      %79 = dma.done [#allocation9], 512
    $region45: #{tpu_custom_call.1} parent=1 // pred_fallthru
      _
    %v80 = vld [vmem:[#allocation2] sm:$0x3]
    %v81 = vld [vmem:[#allocation5] sm:$0xff]
    %v82 = vld [vmem:[#allocation5 + $0x8] sm:$0xff]
    %v83 = vld [vmem:[%s2] sm:$0x1]
    %v85 = vlaneseq
    %v86 = vshrl.u32 %v85, 7
    %v87 = vsub.s32 0, %v86
    %v88 = vrot.slane %v83, %v87
    %vm90 = vcmask 130048
    %v92 = vsel %vm90, %v80, 0
    %94 = vmatprep.subr.mxu0 0.0
    %95 = vmatpush1.msra.mxu0 0.0
    %96 = vmatprep.subr.mxu0 0.0
    %97 = vmatpush1.msra.mxu0 0.0
    %98 = vmatprep.subr.mxu0 0.0
    %99 = vmatpush1.msra.mxu0 0.0
    %100 = vmatprep.subr.mxu0 0.0
    %101 = vmatpush1.msra.mxu0 0.0
    %102 = vmatprep.subr.mxu0 0.0
    %103 = vmatpush1.msra.mxu0 0.0
    %104 = vmatprep.subr.mxu0 0.0
    %105 = vmatpush1.msra.mxu0 0.0
    %106 = vmatprep.subr.mxu0 0.0
    %107 = vmatpush1.msra.mxu0 0.0
    %108 = vmatprep.subr.mxu0 0.0
    %109 = vmatpush1.msra.mxu0 0.0
    %110 = vmatprep.subr.mxu0 0.0
    %111 = vmatpush1.msra.mxu0 0.0
    %112 = vmatprep.subr.mxu0 0.0
    %113 = vmatpush1.msra.mxu0 0.0
    %114 = vmatprep.subr.mxu0 0.0
    %115 = vmatpush1.msra.mxu0 0.0
    %116 = vmatprep.subr.mxu0 0.0
    %117 = vmatpush1.msra.mxu0 0.0
    %118 = vmatprep.subr.mxu0 0.0
    %119 = vmatpush1.msra.mxu0 0.0
    %120 = vmatprep.subr.mxu0 0.0
    %121 = vmatpush1.msra.mxu0 0.0
    %122 = vmatprep.subr.mxu0 0.0
    %123 = vmatpush1.msra.mxu0 %v82
    %124 = vmatprep.subr.mxu0 0.0
    %125 = vmatpush1.msra.mxu0 %v81
    %126 = vmatprep.subr.mxu0 0.0
    %127 = vmatpush2.msra.mxu0 0.0
    %128 = vmatprep.subr.mxu0 0.0
    %129 = vmatpush2.msra.mxu0 0.0
    %130 = vmatprep.subr.mxu0 0.0
    %131 = vmatpush2.msra.mxu0 0.0
    %132 = vmatprep.subr.mxu0 0.0
    %133 = vmatpush2.msra.mxu0 0.0
    %134 = vmatprep.subr.mxu0 0.0
    %135 = vmatpush2.msra.mxu0 0.0
    %136 = vmatprep.subr.mxu0 0.0
    %137 = vmatpush2.msra.mxu0 0.0
    %138 = vmatprep.subr.mxu0 0.0
    %139 = vmatpush2.msra.mxu0 0.0
    %140 = vmatprep.subr.mxu0 0.0
    %141 = vmatpush2.msra.mxu0 0.0
    %142 = vmatprep.subr.mxu0 0.0
    %143 = vmatpush2.msra.mxu0 0.0
    %144 = vmatprep.subr.mxu0 0.0
    %145 = vmatpush2.msra.mxu0 0.0
    %146 = vmatprep.subr.mxu0 0.0
    %147 = vmatpush2.msra.mxu0 0.0
    %148 = vmatprep.subr.mxu0 0.0
    %149 = vmatpush2.msra.mxu0 0.0
    %150 = vmatprep.subr.mxu0 0.0
    %151 = vmatpush2.msra.mxu0 0.0
    %152 = vmatprep.subr.mxu0 0.0
    %153 = vmatpush2.msra.mxu0 0.0
    %154 = vmatprep.subr.mxu0 0.0
    %155 = vmatpush2.msra.mxu0 0.0
    %156 = vmatprep.subr.mxu0 0.0
    %157 = vmatpush2.msra.mxu0 0.0
    %158 = vmatprep.mubr.f32.mxu0 0.0
    %159 = vmatmul.mubr.f32.gmra.mxu0 %v92
    %v160 = vpop.f32.mrf.mxu0
    %v161 = vadd.f32 %v88, %v160
    %v162 = vpop.f32.mrf.mxu0
    %163 = vdwg.mxu0
    %v164 = vld [vmem:[#allocation7] sm:$0xff]
    %v165 = vld [vmem:[#allocation7 + $0x8] sm:$0xff]
    %v166 = vld [vmem:[%s4] sm:$0x1]
    %v168 = vlaneseq
    %v169 = vshrl.u32 %v168, 7
    %v170 = vsub.s32 0, %v169
    %v171 = vrot.slane %v166, %v170
    %v174 = vsel %vm90, %v161, 0
    %176 = vmatprep.subr.mxu0 0.0
    %177 = vmatpush1.msra.mxu0 0.0
    %178 = vmatprep.subr.mxu0 0.0
    %179 = vmatpush1.msra.mxu0 0.0
    %180 = vmatprep.subr.mxu0 0.0
    %181 = vmatpush1.msra.mxu0 0.0
    %182 = vmatprep.subr.mxu0 0.0
    %183 = vmatpush1.msra.mxu0 0.0
    %184 = vmatprep.subr.mxu0 0.0
    %185 = vmatpush1.msra.mxu0 0.0
    %186 = vmatprep.subr.mxu0 0.0
    %187 = vmatpush1.msra.mxu0 0.0
    %188 = vmatprep.subr.mxu0 0.0
    %189 = vmatpush1.msra.mxu0 0.0
    %190 = vmatprep.subr.mxu0 0.0
    %191 = vmatpush1.msra.mxu0 0.0
    %192 = vmatprep.subr.mxu0 0.0
    %193 = vmatpush1.msra.mxu0 0.0
    %194 = vmatprep.subr.mxu0 0.0
    %195 = vmatpush1.msra.mxu0 0.0
    %196 = vmatprep.subr.mxu0 0.0
    %197 = vmatpush1.msra.mxu0 0.0
    %198 = vmatprep.subr.mxu0 0.0
    %199 = vmatpush1.msra.mxu0 0.0
    %200 = vmatprep.subr.mxu0 0.0
    %201 = vmatpush1.msra.mxu0 0.0
    %202 = vmatprep.subr.mxu0 0.0
    %203 = vmatpush1.msra.mxu0 0.0
    %204 = vmatprep.subr.mxu0 0.0
    %205 = vmatpush1.msra.mxu0 %v165
    %206 = vmatprep.subr.mxu0 0.0
    %207 = vmatpush1.msra.mxu0 %v164
    %208 = vmatprep.subr.mxu0 0.0
    %209 = vmatpush2.msra.mxu0 0.0
    %210 = vmatprep.subr.mxu0 0.0
    %211 = vmatpush2.msra.mxu0 0.0
    %212 = vmatprep.subr.mxu0 0.0
    %213 = vmatpush2.msra.mxu0 0.0
    %214 = vmatprep.subr.mxu0 0.0
    %215 = vmatpush2.msra.mxu0 0.0
    %216 = vmatprep.subr.mxu0 0.0
    %217 = vmatpush2.msra.mxu0 0.0
    %218 = vmatprep.subr.mxu0 0.0
    %219 = vmatpush2.msra.mxu0 0.0
    %220 = vmatprep.subr.mxu0 0.0
    %221 = vmatpush2.msra.mxu0 0.0
    %222 = vmatprep.subr.mxu0 0.0
    %223 = vmatpush2.msra.mxu0 0.0
    %224 = vmatprep.subr.mxu0 0.0
    %225 = vmatpush2.msra.mxu0 0.0
    %226 = vmatprep.subr.mxu0 0.0
    %227 = vmatpush2.msra.mxu0 0.0
    %228 = vmatprep.subr.mxu0 0.0
    %229 = vmatpush2.msra.mxu0 0.0
    %230 = vmatprep.subr.mxu0 0.0
    %231 = vmatpush2.msra.mxu0 0.0
    %232 = vmatprep.subr.mxu0 0.0
    %233 = vmatpush2.msra.mxu0 0.0
    %234 = vmatprep.subr.mxu0 0.0
    %235 = vmatpush2.msra.mxu0 0.0
    %236 = vmatprep.subr.mxu0 0.0
    %237 = vmatpush2.msra.mxu0 0.0
    %238 = vmatprep.subr.mxu0 0.0
    %239 = vmatpush2.msra.mxu0 0.0
    %240 = vmatprep.mubr.f32.mxu0 0.0
    %241 = vmatmul.mubr.f32.gmra.mxu0 %v174
    %v242 = vpop.f32.mrf.mxu0
    %v243 = vadd.f32 %v171, %v242
    %v244 = vpop.f32.mrf.mxu0
    %245 = vdwg.mxu0
    %v246 = vld [vmem:[#allocation8] sm:$0xff]
    %v247 = vld [vmem:[#allocation8 + $0x8] sm:$0xff]
    %v248 = vld [vmem:[#allocation8 + $0x10] sm:$0xff]
    %v249 = vld [vmem:[#allocation8 + $0x18] sm:$0xff]
    %v250 = vld [vmem:[%s6] sm:$0x3]
    %v252 = vlaneseq
    %v253 = vshrl.u32 %v252, 7
    %v254 = vsub.s32 0, %v253
    %v255 = vrot.slane %v250, %v254
    %v256 = vlaneseq
    %v257 = vshrl.u32 %v256, 7
    %v258 = vsub.s32 1, %v257
    %v259 = vrot.slane %v250, %v258
    %v263 = vsel %vm90, %v243, 0
    %265 = vmatprep.subr.mxu0 0.0
    %266 = vmatpush1.msra.mxu0 0.0
    %267 = vmatprep.subr.mxu0 0.0
    %268 = vmatpush1.msra.mxu0 0.0
    %269 = vmatprep.subr.mxu0 0.0
    %270 = vmatpush1.msra.mxu0 0.0
    %271 = vmatprep.subr.mxu0 0.0
    %272 = vmatpush1.msra.mxu0 0.0
    %273 = vmatprep.subr.mxu0 0.0
    %274 = vmatpush1.msra.mxu0 0.0
    %275 = vmatprep.subr.mxu0 0.0
    %276 = vmatpush1.msra.mxu0 0.0
    %277 = vmatprep.subr.mxu0 0.0
    %278 = vmatpush1.msra.mxu0 0.0
    %279 = vmatprep.subr.mxu0 0.0
    %280 = vmatpush1.msra.mxu0 0.0
    %281 = vmatprep.subr.mxu0 0.0
    %282 = vmatpush1.msra.mxu0 0.0
    %283 = vmatprep.subr.mxu0 0.0
    %284 = vmatpush1.msra.mxu0 0.0
    %285 = vmatprep.subr.mxu0 0.0
    %286 = vmatpush1.msra.mxu0 0.0
    %287 = vmatprep.subr.mxu0 0.0
    %288 = vmatpush1.msra.mxu0 0.0
    %289 = vmatprep.subr.mxu0 0.0
    %290 = vmatpush1.msra.mxu0 0.0
    %291 = vmatprep.subr.mxu0 0.0
    %292 = vmatpush1.msra.mxu0 0.0
    %293 = vmatprep.subr.mxu0 %v249
    %294 = vmatpush1.msra.mxu0 %v248
    %295 = vmatprep.subr.mxu0 %v247
    %296 = vmatpush1.msra.mxu0 %v246
    %297 = vmatprep.subr.mxu0 0.0
    %298 = vmatpush2.msra.mxu0 0.0
    %299 = vmatprep.subr.mxu0 0.0
    %300 = vmatpush2.msra.mxu0 0.0
    %301 = vmatprep.subr.mxu0 0.0
    %302 = vmatpush2.msra.mxu0 0.0
    %303 = vmatprep.subr.mxu0 0.0
    %304 = vmatpush2.msra.mxu0 0.0
    %305 = vmatprep.subr.mxu0 0.0
    %306 = vmatpush2.msra.mxu0 0.0
    %307 = vmatprep.subr.mxu0 0.0
    %308 = vmatpush2.msra.mxu0 0.0
    %309 = vmatprep.subr.mxu0 0.0
    %310 = vmatpush2.msra.mxu0 0.0
    %311 = vmatprep.subr.mxu0 0.0
    %312 = vmatpush2.msra.mxu0 0.0
    %313 = vmatprep.subr.mxu0 0.0
    %314 = vmatpush2.msra.mxu0 0.0
    %315 = vmatprep.subr.mxu0 0.0
    %316 = vmatpush2.msra.mxu0 0.0
    %317 = vmatprep.subr.mxu0 0.0
    %318 = vmatpush2.msra.mxu0 0.0
    %319 = vmatprep.subr.mxu0 0.0
    %320 = vmatpush2.msra.mxu0 0.0
    %321 = vmatprep.subr.mxu0 0.0
    %322 = vmatpush2.msra.mxu0 0.0
    %323 = vmatprep.subr.mxu0 0.0
    %324 = vmatpush2.msra.mxu0 0.0
    %325 = vmatprep.subr.mxu0 0.0
    %326 = vmatpush2.msra.mxu0 0.0
    %327 = vmatprep.subr.mxu0 0.0
    %328 = vmatpush2.msra.mxu0 0.0
    %329 = vmatprep.mubr.f32.mxu0 0.0
    %330 = vmatmul.mubr.f32.gmra.mxu0 %v263
    %v331 = vpop.f32.mrf.mxu0
    %v332 = vadd.f32 %v255, %v331
    %v333 = vpop.f32.mrf.mxu0
    %v334 = vadd.f32 %v259, %v333
    %335 = vdwg.mxu0
    %v336 = vtanh.pop %v332
    %v337 = vtanh.pop %v334
    %v340 = vcombine.low %v336, %v337
    %v342 = vunpack.c.l.s4 1983009808
    %v343 = vunpack.c.0.s8 %v342
    %v344 = vlaneseq
    %v345 = vshrl.u32 %v344, 7
    %v346 = vsub.s32 %v343, %v345
    %v347 = vrot.slane %v340, %v346
    %349 = vst [vmem:[#allocation10] sm:$0xf] %v347
    // Predicated region
    $region46: #{tpu_custom_call.1} parent=1 // pred_check
      _
    $region47: #{tpu_custom_call.1} parent=1 // pred_check_branch
      %351 = sbr.rel (0) target = $region49
    $region48: #{tpu_custom_call.1} parent=1 // pred_region
      %s353 = ssub.s32 64, 64
      %354 = vsyncadd [#allocation4], %s353
      %s356 = sshll.u32 [#allocation10], 4
      %s357 = int_to_ptr.vmem [resolvable:$true] %s356
      %359 = dma.vmem_to_hbm [thread:$0]  %s357, 64, %s7, [#allocation4]
    $region49: #{tpu_custom_call.1} parent=1 // pred_fallthru
      _
    // Predicated region
    $region50: #{tpu_custom_call.1} parent=1 // pred_check
      _
    $region51: #{tpu_custom_call.1} parent=1 // pred_check_branch
      %361 = sbr.rel (0) target = $region53
    $region52: #{tpu_custom_call.1} parent=1 // pred_region
      %362 = dma.done [#allocation4], 64
    $region53: #{tpu_custom_call.1} parent=1 // pred_fallthru
      _
    %363 = vsyncpa [#allocation3], 1
    %364 = vsyncpa [#allocation6], 1
    %365 = vsyncpa [#allocation9], 1
    %366 = vsyncpa [#allocation4], 1

</llo_original>
